<compile_context>
chip_gen: v5e
topology: v5e:2x2
jax: 0.10.0
libtpu: 0.0.40
codegen_flags: <defaults>
</compile_context>

<pallas_src>
import functools

import jax
import jax.numpy as jnp
from jax import lax
from jax.experimental import pallas as pl
from jax.experimental.pallas import tpu as pltpu


_DENSE_FOLD_MAX_DIM = 256   # fold W_eff only while In, Out <= this
_MAX_BATCH_TILE = 512       # rows per grid step (multiple of 8 / 16 / 32)


def _round_up(n, m):
    return ((n + m - 1) // m) * m


def _sublane_multiple(dtype):
    # f32 -> 8, bf16 -> 16, int8/fp8 -> 32 (packed sublane granularity)
    return max(8, 32 // jnp.dtype(dtype).itemsize)


def _pick_batch_tile(batch, dtype):
    """Batch-tile rows.  Large tiles amortize the ~0.35us/grid-step pipeline
    overhead; aim for >= 2 grid steps on medium batches so the "parallel"
    grid axis can use both v7x TensorCores.  Never pads the batch: ragged
    last tiles are masked by Pallas."""
    m = _sublane_multiple(dtype)
    tm = min(_MAX_BATCH_TILE, _round_up(pl.cdiv(batch, 2), m))
    if tm >= batch:
        return batch  # single full-dim block (always a legal block shape)
    return tm


def _compiler_params(tile_bytes, resident_bytes):
    # Explicit scoped-VMEM limit: v5e defaults to 16 MiB which is too small
    # once resident weights + double-buffered tiles grow.  Clamp to 64 MiB so
    # the request is also valid on v7x (64 MiB physical per TensorCore).
    need = 2 * tile_bytes + 2 * resident_bytes + (4 << 20)
    limit = int(min(max(need, 32 << 20), 64 << 20))
    return pltpu.CompilerParams(
        dimension_semantics=("parallel",),
        vmem_limit_bytes=limit,
    )
    # TODO(synk): for very large In*Out on v7x, additionally single-buffer the
    # resident weight (pipeline_mode=pl.Buffered(1)) or tile the Out axis; the
    # factored path below already keeps residency at r*(In+Out) so it is not
    # needed at the sizes exercised here.


# ----------------------------------------------------------------------------
# Kernel 1 (small layers): out = x @ W_eff + bias, W_eff resident in VMEM.
# ----------------------------------------------------------------------------
def _dense_fwd_kernel(x_ref, w_ref, bias_ref, o_ref):
    # x: (tm, In), w: (In, Out), bias: (1, Out), o: (tm, Out)
    acc = jnp.dot(x_ref[...], w_ref[...], preferred_element_type=jnp.float32)
    o_ref[...] = (acc + bias_ref[...]).astype(o_ref.dtype)


def _dense_forward(x, w, bias_row):
    batch, in_size = x.shape
    out_size = w.shape[1]
    tm = _pick_batch_tile(batch, x.dtype)
    itemsize = jnp.dtype(x.dtype).itemsize
    tile_bytes = tm * (in_size + out_size) * itemsize
    resident_bytes = in_size * out_size * jnp.dtype(w.dtype).itemsize + out_size * 4
    return pl.pallas_call(
        _dense_fwd_kernel,
        out_shape=jax.ShapeDtypeStruct((batch, out_size), x.dtype),
        grid=(pl.cdiv(batch, tm),),
        in_specs=[
            pl.BlockSpec((tm, in_size), lambda i: (i, 0)),        # x: pipelined tiles
            pl.BlockSpec((in_size, out_size), lambda i: (0, 0)),  # W_eff: resident
            pl.BlockSpec((1, out_size), lambda i: (0, 0)),        # bias: resident
        ],
        out_specs=pl.BlockSpec((tm, out_size), lambda i: (i, 0)),
        compiler_params=_compiler_params(tile_bytes, resident_bytes),
    )(x, w, bias_row)


# ----------------------------------------------------------------------------
# Kernel 2 (large layers): out = (x @ left) @ right^T + bias, both skinny
# factors resident in VMEM (r*(In+Out) words instead of In*Out).
# ----------------------------------------------------------------------------
def _factored_fwd_kernel(x_ref, lhs_ref, rhs_t_ref, bias_ref, o_ref):
    # x: (tm, In), lhs: (In, r), rhs_t: (r, Out), bias: (1, Out), o: (tm, Out)
    xk = jnp.dot(x_ref[...], lhs_ref[...], preferred_element_type=jnp.float32)
    acc = jnp.dot(xk.astype(rhs_t_ref.dtype), rhs_t_ref[...],
                  preferred_element_type=jnp.float32)
    o_ref[...] = (acc + bias_ref[...]).astype(o_ref.dtype)


def _factored_forward(x, lhs, rhs_t, bias_row):
    batch, in_size = x.shape
    r_eff, out_size = rhs_t.shape
    tm = _pick_batch_tile(batch, x.dtype)
    itemsize = jnp.dtype(x.dtype).itemsize
    tile_bytes = tm * (in_size + out_size) * itemsize
    resident_bytes = (r_eff * (in_size + out_size)) * jnp.dtype(lhs.dtype).itemsize \
        + out_size * 4
    return pl.pallas_call(
        _factored_fwd_kernel,
        out_shape=jax.ShapeDtypeStruct((batch, out_size), x.dtype),
        grid=(pl.cdiv(batch, tm),),
        in_specs=[
            pl.BlockSpec((tm, in_size), lambda i: (i, 0)),         # x: pipelined tiles
            pl.BlockSpec((in_size, r_eff), lambda i: (0, 0)),      # left factor: resident
            pl.BlockSpec((r_eff, out_size), lambda i: (0, 0)),     # right^T: resident
            pl.BlockSpec((1, out_size), lambda i: (0, 0)),         # bias: resident
        ],
        out_specs=pl.BlockSpec((tm, out_size), lambda i: (i, 0)),
        compiler_params=_compiler_params(tile_bytes, resident_bytes),
    )(x, lhs, rhs_t, bias_row)


# ----------------------------------------------------------------------------
# Whole forward path compiled as one program per (dlrt_step, rank, dtype).
# ----------------------------------------------------------------------------
@functools.partial(jax.jit, static_argnames=("dlrt_step", "rank", "compute_dtype"))
def _psi_forward(x, U, S, V, K, L, bias, dlrt_step, rank, compute_dtype=None):
    r = rank
    rx2 = 2 * r
    if dlrt_step == "K":
        left, right = K[:, :r], V[:, :r]
    elif dlrt_step == "L":
        left, right = U[:, :rx2], L[:, :rx2]
    elif dlrt_step == "test":
        left = jnp.matmul(U[:, :r], S[:r, :r], precision=lax.Precision.HIGHEST)
        right = V[:, :r]
    else:
        raise ValueError(f"unknown dlrt_step {dlrt_step!r}")

    if compute_dtype is not None:
        x = x.astype(compute_dtype)
        left = left.astype(compute_dtype)
        right = right.astype(compute_dtype)
    bias_row = bias.reshape(1, -1).astype(jnp.float32)

    in_size, out_size = left.shape[0], right.shape[0]
    if in_size <= _DENSE_FOLD_MAX_DIM and out_size <= _DENSE_FOLD_MAX_DIM:
        # Small layer: fold the low-rank factors into one dense effective
        # weight (the MXU pads tiny contractions anyway) -> single dense pass.
        w = jnp.matmul(left, right.T, precision=lax.Precision.HIGHEST)
        return _dense_forward(x, w, bias_row)
    # Large layer: keep the factored form (far fewer FLOPs/bytes, small
    # resident footprint, no dense W_eff round-trip through HBM).
    return _factored_forward(x, left, right.T, bias_row)


# ----------------------------------------------------------------------------
# Module: deterministic parameter init mirroring the PyTorch __init__
# ----------------------------------------------------------------------------
class PSIAugmentedBackwardLowRankLayer:
    def __init__(self, input_size, output_size, rank, key, tol=0.01):
        self.tol = tol
        self.rank = rank
        self.rmax = int(min(input_size, output_size) / 2) - 1
        rmax = self.rmax
        assert 2 * rank <= rmax, (
            f"2*rank ({2 * rank}) exceeds rmax ({rmax}) for "
            f"(input_size={input_size}, output_size={output_size})"
        )

        k_u, k_s, k_v, k_u0, k_b = jax.random.split(key, 5)
        U_raw = jax.random.normal(k_u, (input_size, rmax), dtype=jnp.float32)
        V_raw = jax.random.normal(k_v, (output_size, rmax), dtype=jnp.float32)
        self.S = jax.random.normal(k_s, (rmax, rmax), dtype=jnp.float32)
        self.U, _ = jnp.linalg.qr(U_raw, mode="reduced")
        self.V, _ = jnp.linalg.qr(V_raw, mode="reduced")
        self.U0 = jax.random.normal(k_u0, (input_size, rmax), dtype=jnp.float32)
        self.K = self.U @ self.S
        self.L = self.V @ self.S.T
        self.bias = jax.random.normal(k_b, (output_size,), dtype=jnp.float32)
        # TODO(synk): step()/truncate() (QR/SVD training updates) and write()
        # file I/O are host-side training logic, not part of the forward hot
        # path; not kernelized.

    def forward(self, x, dlrt_step, compute_dtype=None):
        return _psi_forward(
            x, self.U, self.S, self.V, self.K, self.L, self.bias,
            dlrt_step=dlrt_step, rank=self.rank, compute_dtype=compute_dtype)

    # pure-JAX reference for validation
    def forward_ref(self, x, dlrt_step):
        r = self.rank
        rx2 = 2 * r
        if dlrt_step == "K":
            out = (x @ self.K[:, :r]) @ self.V[:, :r].T
        elif dlrt_step == "L":
            out = (x @ self.U[:, :rx2]) @ self.L[:, :rx2].T
        else:  # 'test'
            out = ((x @ self.U[:, :r]) @ self.S[:r, :r]) @ self.V[:, :r].T
        return out + self.bias


# ----------------------------------------------------------------------------
if __name__ == "__main__":
    key = jax.random.PRNGKey(0)
    k_l1, k_l2, k_x1, k_x2 = jax.random.split(key, 4)

    ok = True

    # Small layer -> dense-fold kernel path.  Batch=13 exercises the ragged
    # (non-divisible) last batch tile with no padding.
    layer_small = PSIAugmentedBackwardLowRankLayer(64, 64, 10, k_l1)
    x_small = jax.random.normal(k_x1, (13, 64), dtype=jnp.float32)
    for step in ("K", "L", "test"):
        out = jax.block_until_ready(layer_small.forward(x_small, step))
        ref = layer_small.forward_ref(x_small, step)
        if not jnp.allclose(out, ref, atol=1e-3, rtol=1e-3):
            ok = False
            print(f"MISMATCH small/{step}: max err "
                  f"{float(jnp.max(jnp.abs(out - ref)))}")

    # bf16 activation/weight path (memory-bound win on v6e/v7x): smoke run.
    _ = jax.block_until_ready(
        layer_small.forward(x_small, "test", compute_dtype=jnp.bfloat16))

    # Larger layer (In = Out = 320 > 256) -> factored two-matmul kernel path.
    layer_big = PSIAugmentedBackwardLowRankLayer(320, 320, 10, k_l2)
    x_big = jax.random.normal(k_x2, (24, 320), dtype=jnp.float32)
    for step in ("K", "L", "test"):
        out = jax.block_until_ready(layer_big.forward(x_big, step))
        ref = layer_big.forward_ref(x_big, step)
        if not jnp.allclose(out, ref, atol=1e-3, rtol=1e-3):
            ok = False
            print(f"MISMATCH big/{step}: max err "
                  f"{float(jnp.max(jnp.abs(out - ref)))}")

    if ok:
        print("KERNEL_OK")
</pallas_src>

<mosaic_0001>
module attributes {stable_mosaic.version = 11 : i64} {
  func.func @_dense_fwd_kernel(%arg0: i32, %arg1: memref<8x64xf32, #tpu.memory_space<vmem>>, %arg2: memref<64x64xf32, #tpu.memory_space<vmem>>, %arg3: memref<1x64xf32, #tpu.memory_space<vmem>>, %arg4: memref<8x64xf32, #tpu.memory_space<vmem>>) attributes {dimension_semantics = [#tpu.dimension_semantics<parallel>], iteration_bounds = array<i64: 2>, scalar_prefetch = 0 : i64, scratch_operands = 0 : i64, tpu.core_type = #tpu.core_type<tc>, window_params = [{transform_indices = @transform_0, window_bounds = array<i64: 8, 64>}, {pipeline_mode = #tpu.pipeline_mode<synchronous>, transform_indices = @transform_1, window_bounds = array<i64: 64, 64>}, {pipeline_mode = #tpu.pipeline_mode<synchronous>, transform_indices = @transform_2, window_bounds = array<i64: 1, 64>}, {transform_indices = @transform_3, window_bounds = array<i64: 8, 64>}]} {
    %c0 = arith.constant 0 : index
    %c0_0 = arith.constant 0 : index
    %0 = vector.load %arg1[%c0, %c0_0] : memref<8x64xf32, #tpu.memory_space<vmem>>, vector<8x64xf32>
    %c0_1 = arith.constant 0 : index
    %c0_2 = arith.constant 0 : index
    %1 = vector.load %arg2[%c0_1, %c0_2] : memref<64x64xf32, #tpu.memory_space<vmem>>, vector<64x64xf32>
    %cst = arith.constant dense<0.000000e+00> : vector<8x64xf32>
    %2 = tpu.matmul %0, %1, %cst {dimension_numbers = #tpu.dot_dimension_numbers<[1], [0], [0], [1], [0, 0, 1, 1], [], []>} : vector<8x64xf32>, vector<64x64xf32>, vector<8x64xf32> -> vector<8x64xf32>
    %c0_3 = arith.constant 0 : index
    %c0_4 = arith.constant 0 : index
    %3 = vector.load %arg3[%c0_3, %c0_4] : memref<1x64xf32, #tpu.memory_space<vmem>>, vector<1x64xf32>
    %4 = vector.broadcast %3 : vector<1x64xf32> to vector<8x64xf32>
    %5 = arith.addf %2, %4 : vector<8x64xf32>
    %c0_5 = arith.constant 0 : index
    %c0_6 = arith.constant 0 : index
    %6 = vector.load %arg4[%c0_5, %c0_6] : memref<8x64xf32, #tpu.memory_space<vmem>>, vector<8x64xf32>
    tpu.vector_store %arg4[%c0_5, %c0_6], %5 {strides = array<i32>} : memref<8x64xf32, #tpu.memory_space<vmem>>, vector<8x64xf32>,
    return
  }
  func.func @transform_0(%arg0: i32) -> (i32, i32) {
    %c0_i32 = arith.constant 0 : i32
    %c0_i32_0 = arith.constant 0 : i32
    return %arg0, %c0_i32 : i32, i32
  }
  func.func @transform_1(%arg0: i32) -> (i32, i32) {
    %c0_i32 = arith.constant 0 : i32
    %c0_i32_0 = arith.constant 0 : i32
    %c0_i32_1 = arith.constant 0 : i32
    return %c0_i32, %c0_i32_0 : i32, i32
  }
  func.func @transform_2(%arg0: i32) -> (i32, i32) {
    %c0_i32 = arith.constant 0 : i32
    %c0_i32_0 = arith.constant 0 : i32
    %c0_i32_1 = arith.constant 0 : i32
    return %c0_i32, %c0_i32_0 : i32, i32
  }
  func.func @transform_3(%arg0: i32) -> (i32, i32) {
    %c0_i32 = arith.constant 0 : i32
    %c0_i32_0 = arith.constant 0 : i32
    return %arg0, %c0_i32 : i32, i32
  }
}

</mosaic_0001>

<llo_original>
// kernel: _psi_forward.1
$region0: #{_psi_forward.1}
  #allocation0 [shape = 'u32[]', space=smem, size = 0x4, offset = 0x4, fixed_abs, tag = 'smem constant byte address 0x4 - core index']
  #allocation1 [shape = 'u32[72,128]{1,0:T(1,128)}', space=vmem, size = 0x9000, scoped, tag = 'internal scratch']
  %s0 = inlined_call_operand.vmem [shape: f32[13,64], index: 0, kind: input, shape index: {}]
  %s1 = inlined_call_operand.vmem [shape: f32[64,64], index: 1, kind: input, shape index: {}]
  %s2 = inlined_call_operand.vmem [shape: f32[1,64], index: 2, kind: input, shape index: {}]
  %s3 = inlined_call_operand.hbm [shape: f32[13,64], index: 3, kind: output, shape index: {}]
  %s4 = sld [smem:[#allocation0]]
  $region45: #{_psi_forward.1} parent=0
    _
  %s6 = ssub.s32 1, %s4
  %s7 = scalar_select 0, %s6, %s4
  $region1: #{_psi_forward.1} parent=0
    #allocation2 [shape = 'u8[8192]{0}', space=vmem, size = 0x2000, scoped, tag = 'output window, operand 0']
    #allocation3 [shape = 's32[2]{0}', space=sflag, size = 0x8, scoped, tag = 'scoped memory for _psi_forward.1']
    %8 = vsyncpa [#allocation3], 0
    %s9 = scalar_lea.sflag [#allocation3], 1
    %10 = vsyncpa %s9, 0
    loop: start=0, step=1, limit=4
    $region2: #{_psi_forward.1} parent=1 // loop_pre_header
      _
    $region3: #{_psi_forward.1} parent=1 // loop_header
      %s12 = sphi 0, %s16
      %p13 = scmp.ge.s32.totalorder %s12, 4
      %s22 = sphi 0, %s24
      %s25 = sphi 0, %s22
      %s26 = sphi 0, %s25
      %s42 = sphi 0, %s26
      %s46 = sphi 0, %s46
      %s48 = sphi 0, %s46
      %s49 = sphi 0, %s48
      %s63 = sphi 0, %s49
      %s67 = sphi 0, %s67
      %s69 = sphi 0, %s67
      %s70 = sphi 0, %s69
      %s84 = sphi 0, %s70
      %s90 = sphi 0, %s92
      %s93 = sphi 0, %s90
      %s94 = sphi 0, %s93
      %s110 = sphi 0, %s94
    $region4: #{_psi_forward.1} parent=1 // loop_header_branch
      %15 = sbr.rel (%p13) target = $region8
    $region5: #{_psi_forward.1} parent=1 // loop_body
      %s17 = ssub.s32 %s12, 1
      %s18 = ssub.s32 %s12, 2
      %s19 = sadd.s32 %s12, 1
      %s20 = ssub.s32 %s12, %s19
      %p21 = scmp.eq.s32.totalorder %s20, 0
      %s23 = sadd.s32 %s22, 1
      %s24 = scalar_select %p21, %s22, %s23
      %p27 = pneg %p21
      %p28 = scmp.eq.s32.totalorder %s12, 1
      %p29 = por %p27, %p28
      %p30 = scmp.ne.s32.totalorder %s22, %s25
      %p31 = scmp.eq.s32.totalorder %s12, 0
      %p32 = por %p30, %p31
      %p33 = scmp.ne.s32.totalorder %s22, %s25
      %p34 = scmp.eq.s32.totalorder %s17, 1
      %p35 = por %p33, %p34
      %p36 = scmp.ne.s32.totalorder %s25, %s26
      %p37 = scmp.eq.s32.totalorder %s17, 0
      %p38 = por %p36, %p37
      %p39 = scmp.ne.s32.totalorder %s25, %s26
      %p40 = scmp.eq.s32.totalorder %s18, 1
      %p41 = por %p39, %p40
      %p43 = scmp.ne.s32.totalorder %s26, %s42
      %p44 = scmp.eq.s32.totalorder %s18, 0
      %p45 = por %p43, %p44
      %s47 = sadd.s32 %s46, 1
      %p50 = scmp.eq.s32.totalorder %s12, 1
      %p51 = scmp.ne.s32.totalorder %s46, %s48
      %p52 = scmp.eq.s32.totalorder %s12, 0
      %p53 = por %p51, %p52
      %p54 = scmp.ne.s32.totalorder %s46, %s48
      %p55 = scmp.eq.s32.totalorder %s17, 1
      %p56 = por %p54, %p55
      %p57 = scmp.ne.s32.totalorder %s48, %s49
      %p58 = scmp.eq.s32.totalorder %s17, 0
      %p59 = por %p57, %p58
      %p60 = scmp.ne.s32.totalorder %s48, %s49
      %p61 = scmp.eq.s32.totalorder %s18, 1
      %p62 = por %p60, %p61
      %p64 = scmp.ne.s32.totalorder %s49, %s63
      %p65 = scmp.eq.s32.totalorder %s18, 0
      %p66 = por %p64, %p65
      %s68 = sadd.s32 %s67, 1
      %p71 = scmp.eq.s32.totalorder %s12, 1
      %p72 = scmp.ne.s32.totalorder %s67, %s69
      %p73 = scmp.eq.s32.totalorder %s12, 0
      %p74 = por %p72, %p73
      %p75 = scmp.ne.s32.totalorder %s67, %s69
      %p76 = scmp.eq.s32.totalorder %s17, 1
      %p77 = por %p75, %p76
      %p78 = scmp.ne.s32.totalorder %s69, %s70
      %p79 = scmp.eq.s32.totalorder %s17, 0
      %p80 = por %p78, %p79
      %p81 = scmp.ne.s32.totalorder %s69, %s70
      %p82 = scmp.eq.s32.totalorder %s18, 1
      %p83 = por %p81, %p82
      %p85 = scmp.ne.s32.totalorder %s70, %s84
      %p86 = scmp.eq.s32.totalorder %s18, 0
      %p87 = por %p85, %p86
      %s88 = ssub.s32 %s12, %s19
      %p89 = scmp.eq.s32.totalorder %s88, 0
      %s91 = sadd.s32 %s90, 1
      %s92 = scalar_select %p89, %s90, %s91
      %p95 = pneg %p89
      %p96 = scmp.eq.s32.totalorder %s12, 1
      %p97 = por %p95, %p96
      %p98 = scmp.ne.s32.totalorder %s90, %s93
      %p99 = scmp.eq.s32.totalorder %s12, 0
      %p100 = por %p98, %p99
      %p101 = scmp.ne.s32.totalorder %s90, %s93
      %p102 = scmp.eq.s32.totalorder %s17, 1
      %p103 = por %p101, %p102
      %p104 = scmp.ne.s32.totalorder %s93, %s94
      %p105 = scmp.eq.s32.totalorder %s17, 0
      %p106 = por %p104, %p105
      %p107 = scmp.ne.s32.totalorder %s93, %s94
      %p108 = scmp.eq.s32.totalorder %s18, 1
      %p109 = por %p107, %p108
      %p111 = scmp.ne.s32.totalorder %s94, %s110
      %p112 = scmp.eq.s32.totalorder %s18, 0
      %p113 = por %p111, %p112
      %p114 = scmp.le.s32.totalorder 1, %s12
      %p115 = scmp.lt.s32.totalorder %s12, 3
      %p116 = pnand %p114, %p115
      %p117 = pneg %p116
      // Predicated region
      $region9: #{_psi_forward.1} parent=5 // pred_check
        _
      $region10: #{_psi_forward.1} parent=5 // pred_check_branch
        %119 = sbr.rel (%p116) target = $region12
      $region11: #{_psi_forward.1} parent=5 // pred_region
        %s120 = ssub.s32 %s12, 1
        // Predicated region
        $region13: #{_psi_forward.1} parent=11 // pred_check
          %p121 = pneg %p59
        $region14: #{_psi_forward.1} parent=11 // pred_check_branch
          %123 = sbr.rel (%p121) target = $region16
        $region15: #{_psi_forward.1} parent=11 // pred_region
          _
        $region16: #{_psi_forward.1} parent=11 // pred_fallthru
          _
        // Predicated region
        $region17: #{_psi_forward.1} parent=11 // pred_check
          %p124 = pneg %p80
        $region18: #{_psi_forward.1} parent=11 // pred_check_branch
          %126 = sbr.rel (%p124) target = $region20
        $region19: #{_psi_forward.1} parent=11 // pred_region
          _
        $region20: #{_psi_forward.1} parent=11 // pred_fallthru
          _
      $region12: #{_psi_forward.1} parent=5 // pred_fallthru
        _
      %p127 = scmp.lt.s32.totalorder %s12, 2
      // Predicated region
      $region21: #{_psi_forward.1} parent=5 // pred_check
        %p128 = pneg %p127
      $region22: #{_psi_forward.1} parent=5 // pred_check_branch
        %130 = sbr.rel (%p128) target = $region24
      $region23: #{_psi_forward.1} parent=5 // pred_region
        // Predicated region
        $region25: #{_psi_forward.1} parent=23 // pred_check
          %p131 = pneg %p32
        $region26: #{_psi_forward.1} parent=23 // pred_check_branch
          %133 = sbr.rel (%p131) target = $region28
        $region27: #{_psi_forward.1} parent=23 // pred_region
          %p134 = scmp.lt.s32.totalorder %s12, 1
          %s135 = scalar_select %p134, %s12, 1
          %s136 = smul.addr %s135, 8
          %s137 = scalar_lea.vmem %s0, %s136
        $region28: #{_psi_forward.1} parent=23 // pred_fallthru
          _
      $region24: #{_psi_forward.1} parent=5 // pred_fallthru
        _
      %p138 = scmp.le.s32.totalorder 1, %s12
      %p139 = scmp.lt.s32.totalorder %s12, 3
      %p140 = pnand %p138, %p139
      %p141 = pneg %p140
      // Predicated region
      $region29: #{_psi_forward.1} parent=5 // pred_check
        _
      $region30: #{_psi_forward.1} parent=5 // pred_check_branch
        %143 = sbr.rel (%p140) target = $region32
      $region31: #{_psi_forward.1} parent=5 // pred_region
        %s144 = ssub.s32 %s12, 1
        %p145 = scmp.lt.s32.totalorder %s17, 1
        %s146 = scalar_select %p145, %s17, 1
        %s147 = smul.addr %s146, 8
        %s148 = scalar_lea.vmem %s0, %s147
        %p149 = pneg %p38
        %p150 = pneg %p35
        %p151 = pneg %p59
        %p152 = pneg %p56
        %p153 = pneg %p80
        %p154 = pneg %p77
        %p155 = pneg %p106
        %p156 = pneg %p103
        %s157 = sand.u32 %s93, 1
        %s158 = scalar_lea.sflag [#allocation3], %s157
        %s159 = sand.u32 %s93, 1
        %s160 = smul.addr %s159, 8
        %s161 = scalar_lea.vmem [#allocation2], %s160
        %p162 = scmp.lt.s32.totalorder %s17, 1
        %s163 = scalar_select %p162, %s17, 1
        %s164 = smul.addr %s163, 8
        %s165 = scalar_lea.vmem %s0, %s164
        %v166 = vld [vmem:[%s165] sm:$0xff]
        %v167 = vld [vmem:[%s1] sm:$0xff]
        %v168 = vld [vmem:[%s1 + $0x8] sm:$0xff]
        %v169 = vld [vmem:[%s1 + $0x10] sm:$0xff]
        %v170 = vld [vmem:[%s1 + $0x18] sm:$0xff]
        %v171 = vld [vmem:[%s1 + $0x20] sm:$0xff]
        %v172 = vld [vmem:[%s1 + $0x28] sm:$0xff]
        %v173 = vld [vmem:[%s1 + $0x30] sm:$0xff]
        %v174 = vld [vmem:[%s1 + $0x38] sm:$0xff]
        %v175 = vld [vmem:[%s2] sm:$0x1]
        %v177 = vperm.slane %v175, 0
        %vm179 = vcmask 523264
        %v181 = vsel %vm179, %v166, 0
        %183 = vmatpush.msra.mxu0 0.0
        %184 = vmatpush.msra.mxu0 0.0
        %185 = vmatpush.msra.mxu0 0.0
        %186 = vmatpush.msra.mxu0 0.0
        %187 = vmatpush.msra.mxu0 0.0
        %188 = vmatpush.msra.mxu0 0.0
        %189 = vmatpush.msra.mxu0 0.0
        %190 = vmatpush.msra.mxu0 0.0
        %191 = vmatpush.msra.mxu0 %v174
        %192 = vmatpush.msra.mxu0 %v173
        %193 = vmatpush.msra.mxu0 %v172
        %194 = vmatpush.msra.mxu0 %v171
        %195 = vmatpush.msra.mxu0 %v170
        %196 = vmatpush.msra.mxu0 %v169
        %197 = vmatpush.msra.mxu0 %v168
        %198 = vmatpush.msra.mxu0 %v167
        %199 = vmatmul.f32.gmra.mxu0 %v181
        %v200 = vpop.f32.mrf.mxu0
        %v201 = vadd.f32 %v177, %v200
        %202 = vdwg.mxu0
        %203 = vst.msk [vmem:[%s161] sm:$0xff] %vm179, %v201
        %s204 = sand.u32 %s93, 1
        %s205 = scalar_lea.sflag [#allocation3], %s204
        %s206 = sand.u32 %s93, 1
        %s207 = smul.addr %s206, 8
        %s208 = scalar_lea.vmem [#allocation2], %s207
        // Predicated region
        $region33: #{_psi_forward.1} parent=31 // pred_check
          %p209 = pneg %p103
        $region34: #{_psi_forward.1} parent=31 // pred_check_branch
          %211 = sbr.rel (%p209) target = $region36
        $region35: #{_psi_forward.1} parent=31 // pred_region
          %213 = vsyncadd %s205, 0
          %s214 = smul.addr %s17, 8
          %s215 = scalar_lea.hbm %s3, %s214
          %s217 = sshll.u32 %s208, 4
          %s218 = int_to_ptr.vmem [resolvable:$true] %s217
          %s219 = sshll.u32 %s215, 4
          %s220 = int_to_ptr.hbm [resolvable:$true] %s219
          %222 = dma.vmem_to_hbm [thread:$0]  %s218, 128, %s220, %s205
        $region36: #{_psi_forward.1} parent=31 // pred_fallthru
          _
      $region32: #{_psi_forward.1} parent=5 // pred_fallthru
        _
      %p223 = scmp.le.s32.totalorder 2, %s12
      // Predicated region
      $region37: #{_psi_forward.1} parent=5 // pred_check
        %p224 = pneg %p223
      $region38: #{_psi_forward.1} parent=5 // pred_check_branch
        %226 = sbr.rel (%p224) target = $region40
      $region39: #{_psi_forward.1} parent=5 // pred_region
        %s227 = ssub.s32 %s12, 2
        // Predicated region
        $region41: #{_psi_forward.1} parent=39 // pred_check
          %p228 = pneg %p109
        $region42: #{_psi_forward.1} parent=39 // pred_check_branch
          %230 = sbr.rel (%p228) target = $region44
        $region43: #{_psi_forward.1} parent=39 // pred_region
          %s231 = sand.u32 %s94, 1
          %s232 = scalar_lea.sflag [#allocation3], %s231
          %s233 = sand.u32 %s94, 1
          %s234 = smul.addr %s233, 8
          %s235 = scalar_lea.vmem [#allocation2], %s234
          %237 = dma.done %s232, 128
        $region44: #{_psi_forward.1} parent=39 // pred_fallthru
          _
      $region40: #{_psi_forward.1} parent=5 // pred_fallthru
        _
    $region6: #{_psi_forward.1} parent=1 // loop_footer
      %s16 = sadd.s32 1, %s12
    $region7: #{_psi_forward.1} parent=1 // loop_footer_branch
      %11 = sbr.rel target = $region3
    $region8: #{_psi_forward.1} parent=1 // loop_exit
      _
    %238 = vsyncpa [#allocation3], 1
    %s239 = scalar_lea.sflag [#allocation3], 1
    %240 = vsyncpa %s239, 1

</llo_original>
